<compile_context>
chip_gen: v7x
topology: tpu7x:2x2x1
jax: 0.10.0
libtpu: 0.0.40
codegen_flags: <defaults>
</compile_context>

<pallas_src>
import math
from functools import partial

import jax
import jax.numpy as jnp
from jax import lax
from jax.experimental import pallas as pl
from jax.experimental.pallas import tpu as pltpu

NEG_INF = -1e30                      # large finite negative: no exp(-inf - -inf) NaN risk
_VMEM_LIMIT = 48 * 1024 * 1024       # explicit scoped-VMEM limit (fits v7x's 64 MiB core)
_DEFAULT_TILE = 256


def _qkv_proj_kernel(x_ref, w_ref, qkv_ref, *, num_heads, head_dim):
    """Fused QKV projection, emitted head-major.

    x_ref:   (1, TS, d_in)
    w_ref:   (d_in, 3*d_out)   (Q columns pre-scaled by 1/sqrt(head_dim))
    qkv_ref: (1, 3*H, TS, hd)
    """
    x = x_ref[0]                                                        # (TS, d_in)
    qkv = jnp.dot(x, w_ref[...], preferred_element_type=jnp.float32)    # (TS, 3*d_out)
    ts = x.shape[0]
    qkv = qkv.reshape(ts, 3 * num_heads, head_dim)
    qkv = jnp.transpose(qkv, (1, 0, 2))                                  # (3H, TS, hd)
    qkv_ref[0] = qkv.astype(qkv_ref.dtype)


def _flash_attn_kernel(q_ref, k_ref, v_ref, wo_ref, bo_ref, o_ref,
                       m_ref, l_ref, acc_ref, *, q_tile, kv_tile):
    """Causal flash attention + fused output projection.

    q_ref:  (1, H, TQ, hd)   (already scaled by 1/sqrt(hd) via the folded weight)
    k_ref:  (1, H, TK, hd)
    v_ref:  (1, H, TK, hd)
    wo_ref: (d_out, d_out)   bo_ref: (1, d_out)
    o_ref:  (1, TQ, d_out)
    scratch: m (H,TQ,1), l (H,TQ,1), acc (H,TQ,hd)  — all f32
    """
    qi = pl.program_id(1)
    ki = pl.program_id(2)
    n_kv = pl.num_programs(2)

    @pl.when(ki == 0)
    def _init():
        m_ref[...] = jnp.full(m_ref.shape, NEG_INF, dtype=jnp.float32)
        l_ref[...] = jnp.zeros(l_ref.shape, dtype=jnp.float32)
        acc_ref[...] = jnp.zeros(acc_ref.shape, dtype=jnp.float32)

    q_start = qi * q_tile
    q_last = q_start + (q_tile - 1)
    kv_start = ki * kv_tile

    # Skip KV tiles that lie entirely above the causal diagonal.
    @pl.when(kv_start <= q_last)
    def _update():
        q = q_ref[0]                                                     # (H, TQ, hd)
        k = k_ref[0]                                                     # (H, TK, hd)
        v = v_ref[0]                                                     # (H, TK, hd)

        # batched over heads, contraction on the minor dim (no K transpose)
        s = jnp.einsum("hqd,hkd->hqk", q, k,
                       preferred_element_type=jnp.float32)               # (H, TQ, TK)

        # tile-local causal mask, built once per grid step, broadcast over heads
        row = q_start + lax.broadcasted_iota(jnp.int32, (q_tile, kv_tile), 0)
        col = kv_start + lax.broadcasted_iota(jnp.int32, (q_tile, kv_tile), 1)
        s = jnp.where((col <= row)[None], s, NEG_INF)

        m_prev = m_ref[...]
        m_new = jnp.maximum(m_prev, s.max(-1, keepdims=True))            # (H, TQ, 1)
        alpha = jnp.exp(m_prev - m_new)
        p = jnp.exp(s - m_new)                                           # (H, TQ, TK)
        l_ref[...] = alpha * l_ref[...] + p.sum(-1, keepdims=True)
        acc_ref[...] = alpha * acc_ref[...] + jnp.einsum(
            "hqk,hkd->hqd", p.astype(v.dtype), v,
            preferred_element_type=jnp.float32)
        m_ref[...] = m_new

    @pl.when(ki == n_kv - 1)
    def _finalize():
        # deferred normalization on (H,TQ,hd) only, via EUP approximate reciprocal
        ctx = acc_ref[...] * pl.reciprocal(l_ref[...], approx=True)      # (H, TQ, hd)
        h, tq, hd = ctx.shape
        ctx = jnp.transpose(ctx, (1, 0, 2)).reshape(tq, h * hd)          # (TQ, d_out) lane-dense
        out = jnp.dot(ctx.astype(wo_ref.dtype), wo_ref[...],
                      preferred_element_type=jnp.float32)
        out = out + bo_ref[...].astype(jnp.float32)
        o_ref[0] = out.astype(o_ref.dtype)


def multi_head_attention(x, wq, wk, wv, wo, bo, *, num_heads,
                         q_tile=None, kv_tile=None, seq_tile=None):
    """x: (B, T, d_in); wq/wk/wv: (d_in, d_out); wo: (d_out, d_out); bo: (d_out,)."""
    B, T, d_in = x.shape
    d_out = wq.shape[1]
    assert d_out % num_heads == 0
    head_dim = d_out // num_heads
    H = num_heads

    # Fold the 1/sqrt(head_dim) score scale into the query weights and fuse Q/K/V.
    scale = 1.0 / math.sqrt(head_dim)
    w_qkv = jnp.concatenate([wq * scale, wk, wv], axis=1)   # (d_in, 3*d_out)
    bo2 = bo.reshape(1, d_out)

    def _pick(tile):
        t = _DEFAULT_TILE if tile is None else tile
        t = min(t, T)
        # TODO(synk): pad ragged sequence lengths instead of requiring divisibility.
        assert T % t == 0, "sequence length must be divisible by the tile size"
        return t

    ts = _pick(seq_tile)
    tq = _pick(q_tile)
    tk = _pick(kv_tile)

    # ---- kernel 1: fused QKV projection, head-major output (B, 3H, T, hd) ----
    qkv = pl.pallas_call(
        partial(_qkv_proj_kernel, num_heads=H, head_dim=head_dim),
        out_shape=jax.ShapeDtypeStruct((B, 3 * H, T, head_dim), x.dtype),
        grid_spec=pltpu.PrefetchScalarGridSpec(
            num_scalar_prefetch=0,
            grid=(B, T // ts),
            in_specs=[
                pl.BlockSpec((1, ts, d_in), lambda b, t: (b, t, 0)),
                pl.BlockSpec((d_in, 3 * d_out), lambda b, t: (0, 0)),
            ],
            out_specs=pl.BlockSpec((1, 3 * H, ts, head_dim),
                                   lambda b, t: (b, 0, t, 0)),
        ),
        compiler_params=pltpu.CompilerParams(
            dimension_semantics=("parallel", "parallel"),
            vmem_limit_bytes=_VMEM_LIMIT),
    )(x, w_qkv)

    n_q = T // tq
    n_kv = T // tk

    def q_map(b, qi, ki):
        return (b, 0, qi, 0)              # constant in ki -> Q block resident across KV loop

    def kv_map(which):
        def _map(b, qi, ki):
            # Clamp: KV tiles entirely above the causal diagonal reuse the previous
            # block index, so their DMA is elided (their compute is skipped by pl.when).
            last_needed = (qi * tq + tq - 1) // tk
            return (b, which, jnp.minimum(ki, last_needed), 0)
        return _map

    # ---- kernel 2: flash attention + output projection ----
    out = pl.pallas_call(
        partial(_flash_attn_kernel, q_tile=tq, kv_tile=tk),
        out_shape=jax.ShapeDtypeStruct((B, T, d_out), x.dtype),
        grid_spec=pltpu.PrefetchScalarGridSpec(
            num_scalar_prefetch=0,
            grid=(B, n_q, n_kv),
            in_specs=[
                pl.BlockSpec((1, H, tq, head_dim), q_map),
                pl.BlockSpec((1, H, tk, head_dim), kv_map(1)),
                pl.BlockSpec((1, H, tk, head_dim), kv_map(2)),
                pl.BlockSpec((d_out, d_out), lambda b, qi, ki: (0, 0)),
                pl.BlockSpec((1, d_out), lambda b, qi, ki: (0, 0)),
            ],
            out_specs=pl.BlockSpec((1, tq, d_out), lambda b, qi, ki: (b, qi, 0)),
            scratch_shapes=[
                pltpu.VMEM((H, tq, 1), jnp.float32),         # m (running max)
                pltpu.VMEM((H, tq, 1), jnp.float32),         # l (running denom)
                pltpu.VMEM((H, tq, head_dim), jnp.float32),  # acc (unnormalized ctx)
            ],
        ),
        compiler_params=pltpu.CompilerParams(
            dimension_semantics=("parallel", "parallel", "arbitrary"),
            vmem_limit_bytes=_VMEM_LIMIT),
    )(qkv, qkv, qkv, wo, bo2)

    # TODO(synk): dropout on attention weights is identity here (inference /
    # dropout=0.0 semantics); training-mode RNG masking not implemented.
    return out


def _reference(x, wq, wk, wv, wo, bo, *, num_heads):
    B, T, d_in = x.shape
    d_out = wq.shape[1]
    hd = d_out // num_heads
    q = (x @ wq).reshape(B, T, num_heads, hd).transpose(0, 2, 1, 3)
    k = (x @ wk).reshape(B, T, num_heads, hd).transpose(0, 2, 1, 3)
    v = (x @ wv).reshape(B, T, num_heads, hd).transpose(0, 2, 1, 3)
    s = jnp.einsum("bhqd,bhkd->bhqk", q, k) / math.sqrt(hd)
    mask = jnp.triu(jnp.ones((T, T), bool), k=1)
    s = jnp.where(mask[None, None], -jnp.inf, s)
    p = jax.nn.softmax(s, axis=-1)
    ctx = jnp.einsum("bhqk,bhkd->bhqd", p, v).transpose(0, 2, 1, 3).reshape(B, T, d_out)
    return ctx @ wo + bo


def _make_inputs(key, B, T, d_in, d_out):
    kx, kq, kk, kv, ko, kb = jax.random.split(key, 6)
    lim_qkv = 1.0 / math.sqrt(d_in)
    lim_o = 1.0 / math.sqrt(d_out)
    x = jax.random.normal(kx, (B, T, d_in), dtype=jnp.float32)
    wq = jax.random.uniform(kq, (d_in, d_out), jnp.float32, -lim_qkv, lim_qkv)
    wk = jax.random.uniform(kk, (d_in, d_out), jnp.float32, -lim_qkv, lim_qkv)
    wv = jax.random.uniform(kv, (d_in, d_out), jnp.float32, -lim_qkv, lim_qkv)
    wo = jax.random.uniform(ko, (d_out, d_out), jnp.float32, -lim_o, lim_o)
    bo = jax.random.uniform(kb, (d_out,), jnp.float32, -lim_o, lim_o)
    return x, wq, wk, wv, wo, bo


if __name__ == "__main__":
    key = jax.random.PRNGKey(0)
    k1, k2 = jax.random.split(key)

    # case 1: module-sized shapes, single tile (B=2, T=8, d_in=d_out=32, H=4)
    B, T, d_in, d_out, H = 2, 8, 32, 32, 4
    x, wq, wk, wv, wo, bo = _make_inputs(k1, B, T, d_in, d_out)
    out = multi_head_attention(x, wq, wk, wv, wo, bo, num_heads=H)
    out = jax.block_until_ready(out)
    ref = _reference(x, wq, wk, wv, wo, bo, num_heads=H)
    assert out.shape == (B, T, d_out)
    assert jnp.allclose(out, ref, atol=2e-3, rtol=2e-3), \
        float(jnp.max(jnp.abs(out - ref)))

    # case 2: multi-tile path (4 query tiles x 4 kv tiles) exercising the online
    # softmax accumulator, causal tile skipping and the DMA-index clamp.
    B2, T2 = 2, 32
    x2, wq2, wk2, wv2, wo2, bo2 = _make_inputs(k2, B2, T2, d_in, d_out)
    out2 = multi_head_attention(x2, wq2, wk2, wv2, wo2, bo2, num_heads=H,
                                q_tile=8, kv_tile=8, seq_tile=8)
    out2 = jax.block_until_ready(out2)
    ref2 = _reference(x2, wq2, wk2, wv2, wo2, bo2, num_heads=H)
    assert out2.shape == (B2, T2, d_out)
    assert jnp.allclose(out2, ref2, atol=2e-3, rtol=2e-3), \
        float(jnp.max(jnp.abs(out2 - ref2)))

    print("KERNEL_OK")
</pallas_src>

<mosaic_0001>
module attributes {stable_mosaic.version = 11 : i64} {
  func.func @_qkv_proj_kernel(%arg0: i32, %arg1: i32, %arg2: memref<1x8x32xf32, #tpu.memory_space<vmem>>, %arg3: memref<32x96xf32, #tpu.memory_space<vmem>>, %arg4: memref<1x12x8x8xf32, #tpu.memory_space<vmem>>) attributes {dimension_semantics = [#tpu.dimension_semantics<parallel>, #tpu.dimension_semantics<parallel>], iteration_bounds = array<i64: 2, 1>, scalar_prefetch = 0 : i64, scratch_operands = 0 : i64, tpu.core_type = #tpu.core_type<tc>, window_params = [{transform_indices = @transform_0, window_bounds = array<i64: 1, 8, 32>}, {pipeline_mode = #tpu.pipeline_mode<synchronous>, transform_indices = @transform_1, window_bounds = array<i64: 32, 96>}, {transform_indices = @transform_2, window_bounds = array<i64: 1, 12, 8, 8>}]} {
    %c0 = arith.constant 0 : index
    %c0_0 = arith.constant 0 : index
    %c0_1 = arith.constant 0 : index
    %0 = vector.load %arg2[%c0, %c0_0, %c0_1] : memref<1x8x32xf32, #tpu.memory_space<vmem>>, vector<1x8x32xf32>
    %1 = vector.shape_cast %0 : vector<1x8x32xf32> to vector<8x32xf32>
    %c0_2 = arith.constant 0 : index
    %c0_3 = arith.constant 0 : index
    %2 = vector.load %arg3[%c0_2, %c0_3] : memref<32x96xf32, #tpu.memory_space<vmem>>, vector<32x96xf32>
    %cst = arith.constant dense<0.000000e+00> : vector<8x96xf32>
    %3 = tpu.matmul %1, %2, %cst {dimension_numbers = #tpu.dot_dimension_numbers<[1], [0], [0], [1], [0, 0, 1, 1], [], []>} : vector<8x32xf32>, vector<32x96xf32>, vector<8x96xf32> -> vector<8x96xf32>
    %4 = vector.shape_cast %3 : vector<8x96xf32> to vector<8x12x8xf32>
    %5 = tpu.transpose %4, [1, 0, 2] : vector<8x12x8xf32> -> vector<12x8x8xf32>
    %c0_4 = arith.constant 0 : index
    %c0_5 = arith.constant 0 : index
    %c0_6 = arith.constant 0 : index
    %c0_7 = arith.constant 0 : index
    %6 = vector.load %arg4[%c0_4, %c0_5, %c0_6, %c0_7] : memref<1x12x8x8xf32, #tpu.memory_space<vmem>>, vector<1x12x8x8xf32>
    %7 = vector.shape_cast %6 : vector<1x12x8x8xf32> to vector<12x8x8xf32>
    %8 = vector.shape_cast %5 : vector<12x8x8xf32> to vector<1x12x8x8xf32>
    tpu.vector_store %arg4[%c0_4, %c0_5, %c0_6, %c0_7], %8 {strides = array<i32>} : memref<1x12x8x8xf32, #tpu.memory_space<vmem>>, vector<1x12x8x8xf32>,
    return
  }
  func.func @transform_0(%arg0: i32, %arg1: i32) -> (i32, i32, i32) {
    %c0_i32 = arith.constant 0 : i32
    %c0_i32_0 = arith.constant 0 : i32
    return %arg0, %arg1, %c0_i32 : i32, i32, i32
  }
  func.func @transform_1(%arg0: i32, %arg1: i32) -> (i32, i32) {
    %c0_i32 = arith.constant 0 : i32
    %c0_i32_0 = arith.constant 0 : i32
    %c0_i32_1 = arith.constant 0 : i32
    return %c0_i32, %c0_i32_0 : i32, i32
  }
  func.func @transform_2(%arg0: i32, %arg1: i32) -> (i32, i32, i32, i32) {
    %c0_i32 = arith.constant 0 : i32
    %c0_i32_0 = arith.constant 0 : i32
    %c0_i32_1 = arith.constant 0 : i32
    return %arg0, %c0_i32, %arg1, %c0_i32_0 : i32, i32, i32, i32
  }
}

</mosaic_0001>

<llo_original>
// kernel: tpu_custom_call.1
$region0: #{tpu_custom_call.1}
  #allocation0 [shape = 'u32[]', space=smem, size = 0x4, offset = 0x4, fixed_abs, tag = 'smem constant byte address 0x4 - core index']
  #allocation1 [shape = 'u32[144,128]{1,0:T(1,128)}', space=vmem, size = 0x12000, scoped, tag = 'internal scratch']
  %s0 = inlined_call_operand.hbm [shape: f32[2,8,32], index: 0, kind: input, shape index: {}]
  %s1 = inlined_call_operand.hbm [shape: f32[32,96], index: 1, kind: input, shape index: {}]
  %s2 = inlined_call_operand.vmem [shape: f32[2,12,8,8], index: 2, kind: output, shape index: {}]
  %s3 = sld [smem:[#allocation0]]
  $region49: #{tpu_custom_call.1} parent=0
    _
  %s5 = ssub.s32 1, %s3
  %s6 = scalar_select 0, %s5, %s3
  $region1: #{tpu_custom_call.1} parent=0
    #allocation2 [shape = 'u8[8192]{0}', space=vmem, size = 0x2000, scoped, tag = 'input window, operand 0']
    #allocation3 [shape = 's32[2]{0}', space=sflag, size = 0x8, scoped, tag = 'scoped memory for tpu_custom_call.1']
    #allocation4 [shape = 'u8[16384]{0}', space=vmem, size = 0x4000, scoped, tag = 'input window, operand 1, single buffered']
    #allocation5 [shape = 's32[1]{0}', space=sflag, size = 0x4, scoped, tag = 'scoped memory for tpu_custom_call.1']
    %7 = vsyncpa [#allocation3], 0
    %s8 = scalar_lea.sflag [#allocation3], 1
    %9 = vsyncpa %s8, 0
    %10 = vsyncpa [#allocation5], 0
    loop: start=0, step=1, limit=4
    $region2: #{tpu_custom_call.1} parent=1 // loop_pre_header
      _
    $region3: #{tpu_custom_call.1} parent=1 // loop_header
      %s12 = sphi 0, %s16
      %p13 = scmp.ge.s32.totalorder %s12, 4
      %s19 = sphi 0, %s31
      %s20 = sphi 0, %s27
      %s21 = sphi 0, %s19
      %s22 = sphi 0, %s20
      %s23 = sphi 0, %s21
      %s24 = sphi 0, %s22
      %s36 = sphi 0, %s38
      %s39 = sphi 0, %s36
      %s40 = sphi 0, %s39
      %s56 = sphi 0, %s40
      %s60 = sphi 0, %s60
      %s62 = sphi 0, %s60
      %s63 = sphi 0, %s62
      %s77 = sphi 0, %s63
      %s85 = sphi 0, %s87
      %s88 = sphi 0, %s85
      %s89 = sphi 0, %s88
      %s105 = sphi 0, %s89
    $region4: #{tpu_custom_call.1} parent=1 // loop_header_branch
      %15 = sbr.rel (%p13) target = $region8
    $region5: #{tpu_custom_call.1} parent=1 // loop_body
      %s17 = ssub.s32 %s12, 1
      %s18 = ssub.s32 %s12, 2
      %s25 = sadd.s32 1, %s20
      %p26 = scmp.ge.s32.totalorder %s25, 1
      %s27 = scalar_select %p26, 0, %s25
      %s28 = sadd.s32 1, %s19
      %s29 = scalar_select %p26, %s28, %s19
      %p30 = scmp.ge.s32.totalorder %s29, 2
      %s31 = scalar_select %p30, 0, %s29
      %s32 = ssub.s32 %s19, %s31
      %s33 = ssub.s32 %s20, %s27
      %s34 = sor.u32 %s32, %s33
      %p35 = scmp.eq.s32.totalorder %s34, 0
      %s37 = sadd.s32 %s36, 1
      %s38 = scalar_select %p35, %s36, %s37
      %p41 = pneg %p35
      %p42 = scmp.eq.s32.totalorder %s12, 1
      %p43 = por %p41, %p42
      %p44 = scmp.ne.s32.totalorder %s36, %s39
      %p45 = scmp.eq.s32.totalorder %s12, 0
      %p46 = por %p44, %p45
      %p47 = scmp.ne.s32.totalorder %s36, %s39
      %p48 = scmp.eq.s32.totalorder %s17, 1
      %p49 = por %p47, %p48
      %p50 = scmp.ne.s32.totalorder %s39, %s40
      %p51 = scmp.eq.s32.totalorder %s17, 0
      %p52 = por %p50, %p51
      %p53 = scmp.ne.s32.totalorder %s39, %s40
      %p54 = scmp.eq.s32.totalorder %s18, 1
      %p55 = por %p53, %p54
      %p57 = scmp.ne.s32.totalorder %s40, %s56
      %p58 = scmp.eq.s32.totalorder %s18, 0
      %p59 = por %p57, %p58
      %s61 = sadd.s32 %s60, 1
      %p64 = scmp.eq.s32.totalorder %s12, 1
      %p65 = scmp.ne.s32.totalorder %s60, %s62
      %p66 = scmp.eq.s32.totalorder %s12, 0
      %p67 = por %p65, %p66
      %p68 = scmp.ne.s32.totalorder %s60, %s62
      %p69 = scmp.eq.s32.totalorder %s17, 1
      %p70 = por %p68, %p69
      %p71 = scmp.ne.s32.totalorder %s62, %s63
      %p72 = scmp.eq.s32.totalorder %s17, 0
      %p73 = por %p71, %p72
      %p74 = scmp.ne.s32.totalorder %s62, %s63
      %p75 = scmp.eq.s32.totalorder %s18, 1
      %p76 = por %p74, %p75
      %p78 = scmp.ne.s32.totalorder %s63, %s77
      %p79 = scmp.eq.s32.totalorder %s18, 0
      %p80 = por %p78, %p79
      %s81 = ssub.s32 %s19, %s31
      %s82 = ssub.s32 %s20, %s27
      %s83 = sor.u32 %s81, %s82
      %p84 = scmp.eq.s32.totalorder %s83, 0
      %s86 = sadd.s32 %s85, 1
      %s87 = scalar_select %p84, %s85, %s86
      %p90 = pneg %p84
      %p91 = scmp.eq.s32.totalorder %s12, 1
      %p92 = por %p90, %p91
      %p93 = scmp.ne.s32.totalorder %s85, %s88
      %p94 = scmp.eq.s32.totalorder %s12, 0
      %p95 = por %p93, %p94
      %p96 = scmp.ne.s32.totalorder %s85, %s88
      %p97 = scmp.eq.s32.totalorder %s17, 1
      %p98 = por %p96, %p97
      %p99 = scmp.ne.s32.totalorder %s88, %s89
      %p100 = scmp.eq.s32.totalorder %s17, 0
      %p101 = por %p99, %p100
      %p102 = scmp.ne.s32.totalorder %s88, %s89
      %p103 = scmp.eq.s32.totalorder %s18, 1
      %p104 = por %p102, %p103
      %p106 = scmp.ne.s32.totalorder %s89, %s105
      %p107 = scmp.eq.s32.totalorder %s18, 0
      %p108 = por %p106, %p107
      %p109 = scmp.le.s32.totalorder 1, %s12
      %p110 = scmp.lt.s32.totalorder %s12, 3
      %p111 = pnand %p109, %p110
      %p112 = pneg %p111
      // Predicated region
      $region9: #{tpu_custom_call.1} parent=5 // pred_check
        _
      $region10: #{tpu_custom_call.1} parent=5 // pred_check_branch
        %114 = sbr.rel (%p111) target = $region12
      $region11: #{tpu_custom_call.1} parent=5 // pred_region
        %s115 = ssub.s32 %s12, 1
        // Predicated region
        $region13: #{tpu_custom_call.1} parent=11 // pred_check
          %p116 = pneg %p73
        $region14: #{tpu_custom_call.1} parent=11 // pred_check_branch
          %118 = sbr.rel (%p116) target = $region16
        $region15: #{tpu_custom_call.1} parent=11 // pred_region
          %s120 = ssub.s32 512, 512
          %121 = vsyncadd [#allocation5], %s120
          %s122 = sshll.u32 [#allocation4], 4
          %s123 = int_to_ptr.vmem [resolvable:$true] %s122
          %128 = dma.hbm_to_vmem [thread:$0]  %s1, 512, %s123, [#allocation5], 128, 128, 8
        $region16: #{tpu_custom_call.1} parent=11 // pred_fallthru
          _
      $region12: #{tpu_custom_call.1} parent=5 // pred_fallthru
        _
      %p129 = scmp.lt.s32.totalorder %s12, 2
      // Predicated region
      $region17: #{tpu_custom_call.1} parent=5 // pred_check
        %p130 = pneg %p129
      $region18: #{tpu_custom_call.1} parent=5 // pred_check_branch
        %132 = sbr.rel (%p130) target = $region20
      $region19: #{tpu_custom_call.1} parent=5 // pred_region
        // Predicated region
        $region21: #{tpu_custom_call.1} parent=19 // pred_check
          %p133 = pneg %p46
        $region22: #{tpu_custom_call.1} parent=19 // pred_check_branch
          %135 = sbr.rel (%p133) target = $region24
        $region23: #{tpu_custom_call.1} parent=19 // pred_region
          %s136 = sand.u32 %s36, 1
          %s137 = scalar_lea.sflag [#allocation3], %s136
          %s138 = sand.u32 %s36, 1
          %s139 = smul.addr %s138, 8
          %s140 = scalar_lea.vmem [#allocation2], %s139
          %s142 = ssub.s32 128, 128
          %143 = vsyncadd %s137, %s142
          %s144 = sadd.s32 %s20, %s19
          %s145 = smul.addr %s144, 128
          %s146 = scalar_lea.hbm %s0, %s145
          %s148 = sshll.u32 %s140, 4
          %s149 = int_to_ptr.vmem [resolvable:$true] %s148
          %151 = dma.hbm_to_vmem [thread:$0]  %s146, 128, %s149, %s137
        $region24: #{tpu_custom_call.1} parent=19 // pred_fallthru
          _
      $region20: #{tpu_custom_call.1} parent=5 // pred_fallthru
        _
      %p152 = scmp.le.s32.totalorder 1, %s12
      %p153 = scmp.lt.s32.totalorder %s12, 3
      %p154 = pnand %p152, %p153
      %p155 = pneg %p154
      // Predicated region
      $region25: #{tpu_custom_call.1} parent=5 // pred_check
        _
      $region26: #{tpu_custom_call.1} parent=5 // pred_check_branch
        %157 = sbr.rel (%p154) target = $region28
      $region27: #{tpu_custom_call.1} parent=5 // pred_region
        %s158 = ssub.s32 %s12, 1
        %s159 = sand.u32 %s39, 1
        %s160 = scalar_lea.sflag [#allocation3], %s159
        %s161 = sand.u32 %s39, 1
        %s162 = smul.addr %s161, 8
        %s163 = scalar_lea.vmem [#allocation2], %s162
        // Predicated region
        $region29: #{tpu_custom_call.1} parent=27 // pred_check
          %p164 = pneg %p52
        $region30: #{tpu_custom_call.1} parent=27 // pred_check_branch
          %166 = sbr.rel (%p164) target = $region32
        $region31: #{tpu_custom_call.1} parent=27 // pred_region
          %167 = dma.done %s160, 128
        $region32: #{tpu_custom_call.1} parent=27 // pred_fallthru
          _
        // Predicated region
        $region33: #{tpu_custom_call.1} parent=27 // pred_check
          %p168 = pneg %p73
        $region34: #{tpu_custom_call.1} parent=27 // pred_check_branch
          %170 = sbr.rel (%p168) target = $region36
        $region35: #{tpu_custom_call.1} parent=27 // pred_region
          %171 = dma.done [#allocation5], 512
        $region36: #{tpu_custom_call.1} parent=27 // pred_fallthru
          _
        %s172 = sand.u32 %s39, 1
        %s173 = scalar_lea.sflag [#allocation3], %s172
        %s174 = sand.u32 %s39, 1
        %s175 = smul.addr %s174, 8
        %s176 = scalar_lea.vmem [#allocation2], %s175
        %p177 = pneg %p52
        %p178 = pneg %p49
        %p179 = pneg %p73
        %p180 = pneg %p70
        %p181 = pneg %p101
        %p182 = pneg %p98
        %p183 = scmp.lt.s32.totalorder %s21, 1
        %s184 = scalar_select %p183, %s21, 1
        %p185 = scmp.lt.s32.totalorder %s22, 0
        %s186 = scalar_select %p185, %s22, 0
        %s187 = smul.addr %s184, 12
        %s188 = sadd.s32 %s186, %s187
        %s189 = smul.addr %s188, 8
        %s190 = scalar_lea.vmem %s2, %s189
        %p191 = scmp.lt.s32.totalorder %s21, 1
        %s192 = scalar_select %p191, %s21, 1
        %p193 = scmp.lt.s32.totalorder %s22, 0
        %s194 = scalar_select %p193, %s22, 0
        %s195 = smul.addr %s192, 12
        %s196 = sadd.s32 %s194, %s195
        %s197 = smul.addr %s196, 8
        %s198 = scalar_lea.vmem %s2, %s197
        %v199 = vld [vmem:[%s163] sm:$0xff]
        %v200 = vld [vmem:[#allocation4] sm:$0xff]
        %v201 = vld [vmem:[#allocation4 + $0x8] sm:$0xff]
        %v202 = vld [vmem:[#allocation4 + $0x10] sm:$0xff]
        %v203 = vld [vmem:[#allocation4 + $0x18] sm:$0xff]
        %vm204 = vcmask 261120
        %v206 = vsel %vm204, %v199, 0
        %208 = vmatprep.subr.mxu0 0.0
        %209 = vmatpush1.msra.mxu0 %v200
        %210 = vmatprep.subr.mxu0 0.0
        %211 = vmatpush1.msra.mxu0 %v201
        %212 = vmatprep.subr.mxu0 0.0
        %213 = vmatpush1.msra.mxu0 %v202
        %214 = vmatprep.subr.mxu0 0.0
        %215 = vmatpush1.msra.mxu0 %v203
        %216 = vmatprep.subr.mxu0 0.0
        %217 = vmatpush1.msra.mxu0 0.0
        %218 = vmatprep.subr.mxu0 0.0
        %219 = vmatpush1.msra.mxu0 0.0
        %220 = vmatprep.subr.mxu0 0.0
        %221 = vmatpush1.msra.mxu0 0.0
        %222 = vmatprep.subr.mxu0 0.0
        %223 = vmatpush1.msra.mxu0 0.0
        %224 = vmatprep.subr.mxu0 0.0
        %225 = vmatpush1.msra.mxu0 0.0
        %226 = vmatprep.subr.mxu0 0.0
        %227 = vmatpush1.msra.mxu0 0.0
        %228 = vmatprep.subr.mxu0 0.0
        %229 = vmatpush1.msra.mxu0 0.0
        %230 = vmatprep.subr.mxu0 0.0
        %231 = vmatpush1.msra.mxu0 0.0
        %232 = vmatprep.subr.mxu0 0.0
        %233 = vmatpush1.msra.mxu0 0.0
        %234 = vmatprep.subr.mxu0 0.0
        %235 = vmatpush1.msra.mxu0 0.0
        %236 = vmatprep.subr.mxu0 0.0
        %237 = vmatpush1.msra.mxu0 0.0
        %238 = vmatprep.subr.mxu0 0.0
        %239 = vmatpush1.msra.mxu0 0.0
        %240 = vmatprep.subr.mxu0 0.0
        %241 = vmatpush1.msra.mxu0 0.0
        %242 = vmatprep.subr.mxu0 0.0
        %243 = vmatpush1.msra.mxu0 0.0
        %244 = vmatprep.subr.mxu0 0.0
        %245 = vmatpush1.msra.mxu0 0.0
        %246 = vmatprep.subr.mxu0 0.0
        %247 = vmatpush1.msra.mxu0 0.0
        %248 = vmatprep.subr.mxu0 0.0
        %249 = vmatpush1.msra.mxu0 0.0
        %250 = vmatprep.subr.mxu0 0.0
        %251 = vmatpush1.msra.mxu0 0.0
        %252 = vmatprep.subr.mxu0 0.0
        %253 = vmatpush1.msra.mxu0 0.0
        %254 = vmatprep.subr.mxu0 0.0
        %255 = vmatpush1.msra.mxu0 0.0
        %256 = vmatprep.subr.mxu0 0.0
        %257 = vmatpush1.msra.mxu0 0.0
        %258 = vmatprep.subr.mxu0 0.0
        %259 = vmatpush1.msra.mxu0 0.0
        %260 = vmatprep.subr.mxu0 0.0
        %261 = vmatpush1.msra.mxu0 0.0
        %262 = vmatprep.subr.mxu0 0.0
        %263 = vmatpush1.msra.mxu0 0.0
        %264 = vmatprep.subr.mxu0 0.0
        %265 = vmatpush1.msra.mxu0 0.0
        %266 = vmatprep.subr.mxu0 0.0
        %267 = vmatpush1.msra.mxu0 0.0
        %268 = vmatprep.subr.mxu0 0.0
        %269 = vmatpush1.msra.mxu0 0.0
        %270 = vmatprep.subr.mxu0 0.0
        %271 = vmatpush1.msra.mxu0 0.0
        %272 = vmatprep.mubr.f32.mxu0 0.0
        %273 = vmatmul.mubr.f32.gmra.mrb[0].mxu0 %v206
        %v274 = vpop.f32.mrb[0].mxu0
        %v275 = vadd.f32 0.0, %v274
        %v276 = vpop.f32.mrb[0].mxu0
        %277 = vdwg.mxu0
        %279 = vrot.lane.b32.xlu0 %v275, 120
        %v280 = vpop.permute.xlu0 %279
        %282 = vrot.lane.b32.xlu0 %v275, 112
        %v283 = vpop.permute.xlu0 %282
        %285 = vrot.lane.b32.xlu0 %v275, 104
        %v286 = vpop.permute.xlu0 %285
        %288 = vrot.lane.b32.xlu0 %v275, 96
        %v289 = vpop.permute.xlu0 %288
        %291 = vrot.lane.b32.xlu0 %v275, 88
        %v292 = vpop.permute.xlu0 %291
        %294 = vrot.lane.b32.xlu0 %v275, 80
        %v295 = vpop.permute.xlu0 %294
        %297 = vrot.lane.b32.xlu0 %v275, 72
        %v298 = vpop.permute.xlu0 %297
        %300 = vrot.lane.b32.xlu0 %v275, 64
        %v301 = vpop.permute.xlu0 %300
        %303 = vrot.lane.b32.xlu0 %v275, 56
        %v304 = vpop.permute.xlu0 %303
        %306 = vrot.lane.b32.xlu0 %v275, 48
        %v307 = vpop.permute.xlu0 %306
        %309 = vrot.lane.b32.xlu0 %v275, 40
        %v310 = vpop.permute.xlu0 %309
        %v312 = vcombine.low %v275, %v283
        %v313 = vcombine.high %v275, %v283
        %v315 = vunpack.c.l.s4 1983009808
        %v316 = vunpack.c.0.s8 %v315
        %v317 = vlaneseq
        %v318 = vshrl.u32 %v317, 7
        %v319 = vsub.s32 %v316, %v318
        %v320 = vrot.slane %v312, %v319
        %v322 = vunpack.c.l.s4 1983009808
        %v323 = vunpack.c.0.s8 %v322
        %v324 = vlaneseq
        %v325 = vshrl.u32 %v324, 7
        %v326 = vsub.s32 %v323, %v325
        %v327 = vrot.slane %v313, %v326
        %v328 = vcombine.low %v280, %v286
        %v329 = vcombine.high %v280, %v286
        %v331 = vunpack.c.l.s4 1983009808
        %v332 = vunpack.c.0.s8 %v331
        %v333 = vlaneseq
        %v334 = vshrl.u32 %v333, 7
        %v335 = vsub.s32 %v332, %v334
        %v336 = vrot.slane %v328, %v335
        %v338 = vunpack.c.l.s4 1983009808
        %v339 = vunpack.c.0.s8 %v338
        %v340 = vlaneseq
        %v341 = vshrl.u32 %v340, 7
        %v342 = vsub.s32 %v339, %v341
        %v343 = vrot.slane %v329, %v342
        %v344 = vcombine.low %v289, %v295
        %v345 = vcombine.high %v289, %v295
        %v347 = vunpack.c.l.s4 1983009808
        %v348 = vunpack.c.0.s8 %v347
        %v349 = vlaneseq
        %v350 = vshrl.u32 %v349, 7
        %v351 = vsub.s32 %v348, %v350
        %v352 = vrot.slane %v344, %v351
        %v354 = vunpack.c.l.s4 1983009808
        %v355 = vunpack.c.0.s8 %v354
        %v356 = vlaneseq
        %v357 = vshrl.u32 %v356, 7
        %v358 = vsub.s32 %v355, %v357
        %v359 = vrot.slane %v345, %v358
        %v360 = vcombine.low %v292, %v298
        %v361 = vcombine.high %v292, %v298
        %v363 = vunpack.c.l.s4 1983009808
        %v364 = vunpack.c.0.s8 %v363
        %v365 = vlaneseq
        %v366 = vshrl.u32 %v365, 7
        %v367 = vsub.s32 %v364, %v366
        %v368 = vrot.slane %v360, %v367
        %v370 = vunpack.c.l.s4 1983009808
        %v371 = vunpack.c.0.s8 %v370
        %v372 = vlaneseq
        %v373 = vshrl.u32 %v372, 7
        %v374 = vsub.s32 %v371, %v373
        %v375 = vrot.slane %v361, %v374
        %v376 = vcombine.low %v320, %v336
        %v377 = vcombine.high %v320, %v336
        %v379 = vunpack.c.l.s4 1934713408
        %v380 = vunpack.c.0.s8 %v379
        %v381 = vlaneseq
        %v382 = vshrl.u32 %v381, 7
        %v383 = vsub.s32 %v380, %v382
        %v384 = vrot.slane %v376, %v383
        %v386 = vunpack.c.l.s4 1934713408
        %v387 = vunpack.c.0.s8 %v386
        %v388 = vlaneseq
        %v389 = vshrl.u32 %v388, 7
        %v390 = vsub.s32 %v387, %v389
        %v391 = vrot.slane %v377, %v390
        %v392 = vcombine.low %v327, %v343
        %v393 = vcombine.high %v327, %v343
        %v395 = vunpack.c.l.s4 1934713408
        %v396 = vunpack.c.0.s8 %v395
        %v397 = vlaneseq
        %v398 = vshrl.u32 %v397, 7
        %v399 = vsub.s32 %v396, %v398
        %v400 = vrot.slane %v392, %v399
        %v402 = vunpack.c.l.s4 1934713408
        %v403 = vunpack.c.0.s8 %v402
        %v404 = vlaneseq
        %v405 = vshrl.u32 %v404, 7
        %v406 = vsub.s32 %v403, %v405
        %v407 = vrot.slane %v393, %v406
        %v408 = vcombine.low %v352, %v368
        %v409 = vcombine.high %v352, %v368
        %v411 = vunpack.c.l.s4 1934713408
        %v412 = vunpack.c.0.s8 %v411
        %v413 = vlaneseq
        %v414 = vshrl.u32 %v413, 7
        %v415 = vsub.s32 %v412, %v414
        %v416 = vrot.slane %v408, %v415
        %v418 = vunpack.c.l.s4 1934713408
        %v419 = vunpack.c.0.s8 %v418
        %v420 = vlaneseq
        %v421 = vshrl.u32 %v420, 7
        %v422 = vsub.s32 %v419, %v421
        %v423 = vrot.slane %v409, %v422
        %v424 = vcombine.low %v359, %v375
        %v425 = vcombine.high %v359, %v375
        %v427 = vunpack.c.l.s4 1934713408
        %v428 = vunpack.c.0.s8 %v427
        %v429 = vlaneseq
        %v430 = vshrl.u32 %v429, 7
        %v431 = vsub.s32 %v428, %v430
        %v432 = vrot.slane %v424, %v431
        %v434 = vunpack.c.l.s4 1934713408
        %v435 = vunpack.c.0.s8 %v434
        %v436 = vlaneseq
        %v437 = vshrl.u32 %v436, 7
        %v438 = vsub.s32 %v435, %v437
        %v439 = vrot.slane %v425, %v438
        %v440 = vcombine.low %v384, %v416
        %v441 = vcombine.high %v384, %v416
        %v442 = vcombine.low %v391, %v423
        %v443 = vcombine.high %v391, %v423
        %v444 = vcombine.low %v400, %v432
        %v445 = vcombine.high %v400, %v432
        %v446 = vcombine.low %v407, %v439
        %v447 = vcombine.high %v407, %v439
        %v448 = vcombine.low %v301, %v307
        %v449 = vcombine.high %v301, %v307
        %v451 = vunpack.c.l.s4 1983009808
        %v452 = vunpack.c.0.s8 %v451
        %v453 = vlaneseq
        %v454 = vshrl.u32 %v453, 7
        %v455 = vsub.s32 %v452, %v454
        %v456 = vrot.slane %v448, %v455
        %v458 = vunpack.c.l.s4 1983009808
        %v459 = vunpack.c.0.s8 %v458
        %v460 = vlaneseq
        %v461 = vshrl.u32 %v460, 7
        %v462 = vsub.s32 %v459, %v461
        %v463 = vrot.slane %v449, %v462
        %v464 = vcombine.low %v304, %v310
        %v465 = vcombine.high %v304, %v310
        %v467 = vunpack.c.l.s4 1983009808
        %v468 = vunpack.c.0.s8 %v467
        %v469 = vlaneseq
        %v470 = vshrl.u32 %v469, 7
        %v471 = vsub.s32 %v468, %v470
        %v472 = vrot.slane %v464, %v471
        %v474 = vunpack.c.l.s4 1983009808
        %v475 = vunpack.c.0.s8 %v474
        %v476 = vlaneseq
        %v477 = vshrl.u32 %v476, 7
        %v478 = vsub.s32 %v475, %v477
        %v479 = vrot.slane %v465, %v478
        %v480 = vcombine.low %v456, %v472
        %v481 = vcombine.high %v456, %v472
        %v483 = vunpack.c.l.s4 1934713408
        %v484 = vunpack.c.0.s8 %v483
        %v485 = vlaneseq
        %v486 = vshrl.u32 %v485, 7
        %v487 = vsub.s32 %v484, %v486
        %v488 = vrot.slane %v480, %v487
        %v490 = vunpack.c.l.s4 1934713408
        %v491 = vunpack.c.0.s8 %v490
        %v492 = vlaneseq
        %v493 = vshrl.u32 %v492, 7
        %v494 = vsub.s32 %v491, %v493
        %v495 = vrot.slane %v481, %v494
        %v496 = vcombine.low %v463, %v479
        %v497 = vcombine.high %v463, %v479
        %v499 = vunpack.c.l.s4 1934713408
        %v500 = vunpack.c.0.s8 %v499
        %v501 = vlaneseq
        %v502 = vshrl.u32 %v501, 7
        %v503 = vsub.s32 %v500, %v502
        %v504 = vrot.slane %v496, %v503
        %v506 = vunpack.c.l.s4 1934713408
        %v507 = vunpack.c.0.s8 %v506
        %v508 = vlaneseq
        %v509 = vshrl.u32 %v508, 7
        %v510 = vsub.s32 %v507, %v509
        %v511 = vrot.slane %v497, %v510
        %v512 = vcombine.high %v488, 0.0
        %v513 = vcombine.high %v495, 0.0
        %v514 = vcombine.high %v504, 0.0
        %v515 = vcombine.high %v511, 0.0
        %v516 = vcombine.low %v440, %v442
        %v517 = vcombine.high %v440, %v442
        %v519 = vunpack.c.l.s4 1983009808
        %v520 = vunpack.c.0.s8 %v519
        %v521 = vlaneseq
        %v522 = vshrl.u32 %v521, 7
        %v523 = vsub.s32 %v520, %v522
        %v524 = vrot.slane %v516, %v523
        %v526 = vunpack.c.l.s4 1983009808
        %v527 = vunpack.c.0.s8 %v526
        %v528 = vlaneseq
        %v529 = vshrl.u32 %v528, 7
        %v530 = vsub.s32 %v527, %v529
        %v531 = vrot.slane %v517, %v530
        %v532 = vcombine.low %v441, %v443
        %v533 = vcombine.high %v441, %v443
        %v535 = vunpack.c.l.s4 1983009808
        %v536 = vunpack.c.0.s8 %v535
        %v537 = vlaneseq
        %v538 = vshrl.u32 %v537, 7
        %v539 = vsub.s32 %v536, %v538
        %v540 = vrot.slane %v532, %v539
        %v542 = vunpack.c.l.s4 1983009808
        %v543 = vunpack.c.0.s8 %v542
        %v544 = vlaneseq
        %v545 = vshrl.u32 %v544, 7
        %v546 = vsub.s32 %v543, %v545
        %v547 = vrot.slane %v533, %v546
        %v548 = vcombine.low %v444, %v446
        %v549 = vcombine.high %v444, %v446
        %v551 = vunpack.c.l.s4 1983009808
        %v552 = vunpack.c.0.s8 %v551
        %v553 = vlaneseq
        %v554 = vshrl.u32 %v553, 7
        %v555 = vsub.s32 %v552, %v554
        %v556 = vrot.slane %v548, %v555
        %v558 = vunpack.c.l.s4 1983009808
        %v559 = vunpack.c.0.s8 %v558
        %v560 = vlaneseq
        %v561 = vshrl.u32 %v560, 7
        %v562 = vsub.s32 %v559, %v561
        %v563 = vrot.slane %v549, %v562
        %v564 = vcombine.low %v445, %v447
        %v565 = vcombine.high %v445, %v447
        %v567 = vunpack.c.l.s4 1983009808
        %v568 = vunpack.c.0.s8 %v567
        %v569 = vlaneseq
        %v570 = vshrl.u32 %v569, 7
        %v571 = vsub.s32 %v568, %v570
        %v572 = vrot.slane %v564, %v571
        %v574 = vunpack.c.l.s4 1983009808
        %v575 = vunpack.c.0.s8 %v574
        %v576 = vlaneseq
        %v577 = vshrl.u32 %v576, 7
        %v578 = vsub.s32 %v575, %v577
        %v579 = vrot.slane %v565, %v578
        %v580 = vcombine.low %v524, %v540
        %v581 = vcombine.high %v524, %v540
        %v583 = vunpack.c.l.s4 1934713408
        %v584 = vunpack.c.0.s8 %v583
        %v585 = vlaneseq
        %v586 = vshrl.u32 %v585, 7
        %v587 = vsub.s32 %v584, %v586
        %v588 = vrot.slane %v580, %v587
        %v590 = vunpack.c.l.s4 1934713408
        %v591 = vunpack.c.0.s8 %v590
        %v592 = vlaneseq
        %v593 = vshrl.u32 %v592, 7
        %v594 = vsub.s32 %v591, %v593
        %v595 = vrot.slane %v581, %v594
        %v596 = vcombine.low %v531, %v547
        %v597 = vcombine.high %v531, %v547
        %v599 = vunpack.c.l.s4 1934713408
        %v600 = vunpack.c.0.s8 %v599
        %v601 = vlaneseq
        %v602 = vshrl.u32 %v601, 7
        %v603 = vsub.s32 %v600, %v602
        %v604 = vrot.slane %v596, %v603
        %v606 = vunpack.c.l.s4 1934713408
        %v607 = vunpack.c.0.s8 %v606
        %v608 = vlaneseq
        %v609 = vshrl.u32 %v608, 7
        %v610 = vsub.s32 %v607, %v609
        %v611 = vrot.slane %v597, %v610
        %v612 = vcombine.low %v556, %v572
        %v613 = vcombine.high %v556, %v572
        %v615 = vunpack.c.l.s4 1934713408
        %v616 = vunpack.c.0.s8 %v615
        %v617 = vlaneseq
        %v618 = vshrl.u32 %v617, 7
        %v619 = vsub.s32 %v616, %v618
        %v620 = vrot.slane %v612, %v619
        %v622 = vunpack.c.l.s4 1934713408
        %v623 = vunpack.c.0.s8 %v622
        %v624 = vlaneseq
        %v625 = vshrl.u32 %v624, 7
        %v626 = vsub.s32 %v623, %v625
        %v627 = vrot.slane %v613, %v626
        %v628 = vcombine.low %v563, %v579
        %v629 = vcombine.high %v563, %v579
        %v631 = vunpack.c.l.s4 1934713408
        %v632 = vunpack.c.0.s8 %v631
        %v633 = vlaneseq
        %v634 = vshrl.u32 %v633, 7
        %v635 = vsub.s32 %v632, %v634
        %v636 = vrot.slane %v628, %v635
        %v638 = vunpack.c.l.s4 1934713408
        %v639 = vunpack.c.0.s8 %v638
        %v640 = vlaneseq
        %v641 = vshrl.u32 %v640, 7
        %v642 = vsub.s32 %v639, %v641
        %v643 = vrot.slane %v629, %v642
        %v644 = vcombine.low %v588, %v620
        %v645 = vcombine.high %v588, %v620
        %v646 = vcombine.low %v595, %v627
        %v647 = vcombine.high %v595, %v627
        %v648 = vcombine.low %v604, %v636
        %v649 = vcombine.high %v604, %v636
        %v650 = vcombine.low %v611, %v643
        %v651 = vcombine.high %v611, %v643
        %v652 = vcombine.low %v488, %v495
        %v654 = vunpack.c.l.s4 1983009808
        %v655 = vunpack.c.0.s8 %v654
        %v656 = vlaneseq
        %v657 = vshrl.u32 %v656, 7
        %v658 = vsub.s32 %v655, %v657
        %v659 = vrot.slane %v652, %v658
        %v660 = vcombine.low %v512, %v513
        %v662 = vunpack.c.l.s4 1983009808
        %v663 = vunpack.c.0.s8 %v662
        %v664 = vlaneseq
        %v665 = vshrl.u32 %v664, 7
        %v666 = vsub.s32 %v663, %v665
        %v667 = vrot.slane %v660, %v666
        %v668 = vcombine.low %v504, %v511
        %v670 = vunpack.c.l.s4 1983009808
        %v671 = vunpack.c.0.s8 %v670
        %v672 = vlaneseq
        %v673 = vshrl.u32 %v672, 7
        %v674 = vsub.s32 %v671, %v673
        %v675 = vrot.slane %v668, %v674
        %v676 = vcombine.low %v514, %v515
        %v678 = vunpack.c.l.s4 1983009808
        %v679 = vunpack.c.0.s8 %v678
        %v680 = vlaneseq
        %v681 = vshrl.u32 %v680, 7
        %v682 = vsub.s32 %v679, %v681
        %v683 = vrot.slane %v676, %v682
        %v684 = vcombine.low %v659, %v667
        %v685 = vcombine.high %v659, %v667
        %v687 = vunpack.c.l.s4 1934713408
        %v688 = vunpack.c.0.s8 %v687
        %v689 = vlaneseq
        %v690 = vshrl.u32 %v689, 7
        %v691 = vsub.s32 %v688, %v690
        %v692 = vrot.slane %v684, %v691
        %v694 = vunpack.c.l.s4 1934713408
        %v695 = vunpack.c.0.s8 %v694
        %v696 = vlaneseq
        %v697 = vshrl.u32 %v696, 7
        %v698 = vsub.s32 %v695, %v697
        %v699 = vrot.slane %v685, %v698
        %v700 = vcombine.low %v675, %v683
        %v701 = vcombine.high %v675, %v683
        %v703 = vunpack.c.l.s4 1934713408
        %v704 = vunpack.c.0.s8 %v703
        %v705 = vlaneseq
        %v706 = vshrl.u32 %v705, 7
        %v707 = vsub.s32 %v704, %v706
        %v708 = vrot.slane %v700, %v707
        %v710 = vunpack.c.l.s4 1934713408
        %v711 = vunpack.c.0.s8 %v710
        %v712 = vlaneseq
        %v713 = vshrl.u32 %v712, 7
        %v714 = vsub.s32 %v711, %v713
        %v715 = vrot.slane %v701, %v714
        %v716 = vcombine.low %v692, %v708
        %v717 = vcombine.high %v692, %v708
        %v718 = vcombine.low %v699, %v715
        %v719 = vcombine.high %v699, %v715
        %vm720 = vcmask 64512
        %721 = vst.msk [vmem:[%s198] sm:$0xff] %vm720, %v644
        %722 = vst.msk [vmem:[%s198 + $0x8] sm:$0xff] %vm720, %v645
        %723 = vst.msk [vmem:[%s198 + $0x10] sm:$0xff] %vm720, %v646
        %724 = vst.msk [vmem:[%s198 + $0x18] sm:$0xff] %vm720, %v647
        %725 = vst.msk [vmem:[%s198 + $0x20] sm:$0xff] %vm720, %v648
        %726 = vst.msk [vmem:[%s198 + $0x28] sm:$0xff] %vm720, %v649
        %727 = vst.msk [vmem:[%s198 + $0x30] sm:$0xff] %vm720, %v650
        %728 = vst.msk [vmem:[%s198 + $0x38] sm:$0xff] %vm720, %v651
        %729 = vst.msk [vmem:[%s198 + $0x40] sm:$0xff] %vm720, %v716
        %730 = vst.msk [vmem:[%s198 + $0x48] sm:$0xff] %vm720, %v717
        %731 = vst.msk [vmem:[%s198 + $0x50] sm:$0xff] %vm720, %v718
        %732 = vst.msk [vmem:[%s198 + $0x58] sm:$0xff] %vm720, %v719
        %p733 = scmp.lt.s32.totalorder %s21, 1
        %s734 = scalar_select %p733, %s21, 1
        %p735 = scmp.lt.s32.totalorder %s22, 0
        %s736 = scalar_select %p735, %s22, 0
        %s737 = smul.addr %s734, 12
        %s738 = sadd.s32 %s736, %s737
        %s739 = smul.addr %s738, 8
        %s740 = scalar_lea.vmem %s2, %s739
        // Predicated region
        $region37: #{tpu_custom_call.1} parent=27 // pred_check
          %p741 = pneg %p98
        $region38: #{tpu_custom_call.1} parent=27 // pred_check_branch
          %743 = sbr.rel (%p741) target = $region40
        $region39: #{tpu_custom_call.1} parent=27 // pred_region
          _
        $region40: #{tpu_custom_call.1} parent=27 // pred_fallthru
          _
      $region28: #{tpu_custom_call.1} parent=5 // pred_fallthru
        _
      %p744 = scmp.le.s32.totalorder 2, %s12
      // Predicated region
      $region41: #{tpu_custom_call.1} parent=5 // pred_check
        %p745 = pneg %p744
      $region42: #{tpu_custom_call.1} parent=5 // pred_check_branch
        %747 = sbr.rel (%p745) target = $region44
      $region43: #{tpu_custom_call.1} parent=5 // pred_region
        %s748 = ssub.s32 %s12, 2
        // Predicated region
        $region45: #{tpu_custom_call.1} parent=43 // pred_check
          %p749 = pneg %p104
        $region46: #{tpu_custom_call.1} parent=43 // pred_check_branch
          %751 = sbr.rel (%p749) target = $region48
        $region47: #{tpu_custom_call.1} parent=43 // pred_region
          %p752 = scmp.lt.s32.totalorder %s23, 1
          %s753 = scalar_select %p752, %s23, 1
          %p754 = scmp.lt.s32.totalorder %s24, 0
          %s755 = scalar_select %p754, %s24, 0
          %s756 = smul.addr %s753, 12
          %s757 = sadd.s32 %s755, %s756
          %s758 = smul.addr %s757, 8
          %s759 = scalar_lea.vmem %s2, %s758
        $region48: #{tpu_custom_call.1} parent=43 // pred_fallthru
          _
      $region44: #{tpu_custom_call.1} parent=5 // pred_fallthru
        _
    $region6: #{tpu_custom_call.1} parent=1 // loop_footer
      %s16 = sadd.s32 1, %s12
    $region7: #{tpu_custom_call.1} parent=1 // loop_footer_branch
      %11 = sbr.rel target = $region3
    $region8: #{tpu_custom_call.1} parent=1 // loop_exit
      _
    %760 = vsyncpa [#allocation3], 1
    %s761 = scalar_lea.sflag [#allocation3], 1
    %762 = vsyncpa %s761, 1
    %763 = vsyncpa [#allocation5], 1

</llo_original>
